<compile_context>
chip_gen: v7x
topology: tpu7x:2x2x1
jax: 0.10.0
libtpu: 0.0.40
codegen_flags: <defaults>
</compile_context>

<pallas_src>
import jax
import jax.numpy as jnp
from jax.experimental import pallas as pl
from jax.experimental.pallas import tpu as pltpu


_LANE = 1024        # lane-dense last dim, multiple of 128
_BLOCK_ROWS = 512   # rows per block: 512*1024*4B = 2 MiB/buffer (f32);
                    # 4 live buffers (in+out, double-buffered) ~= 8 MiB,
                    # safe under default scoped VMEM on v5e/v6e/v7x.


def _binary_tanh_kernel(x_ref, o_ref):
    # sign(tanh(x)*2) with sign(0)=+1  ==  where(x >= 0, 1, -1)
    o_ref[...] = jnp.where(x_ref[...] >= 0, 1.0, -1.0).astype(o_ref.dtype)


def _binary_tanh_impl(x):
    """x: float array of any shape (e.g. NCHW). Returns same shape/dtype."""
    orig_shape = x.shape
    orig_dtype = x.dtype
    n = x.size

    flat = x.reshape(-1)

    # Pad the flat length up to a multiple of the lane width; if more than one
    # block of rows is needed, pad further to a whole number of blocks so the
    # grid divides evenly. Padding is at most one block and is sliced off.
    padded = -(-n // _LANE) * _LANE
    rows = padded // _LANE
    if rows <= _BLOCK_ROWS:
        block_rows = rows                       # single full-slab block
    else:
        block_rows = _BLOCK_ROWS
        rows = -(-rows // _BLOCK_ROWS) * _BLOCK_ROWS
        padded = rows * _LANE

    if padded != n:
        flat = jnp.pad(flat, (0, padded - n))

    x2d = flat.reshape(rows, _LANE)
    grid = (rows // block_rows,)

    out = pl.pallas_call(
        _binary_tanh_kernel,
        out_shape=jax.ShapeDtypeStruct((rows, _LANE), orig_dtype),
        grid_spec=pltpu.PrefetchScalarGridSpec(
            num_scalar_prefetch=0,
            grid=grid,
            in_specs=[pl.BlockSpec((block_rows, _LANE), lambda i: (i, 0))],
            out_specs=pl.BlockSpec((block_rows, _LANE), lambda i: (i, 0)),
        ),
        compiler_params=pltpu.CompilerParams(
            dimension_semantics=("parallel",),
        ),
    )(x2d)

    return out.reshape(-1)[:n].reshape(orig_shape)


binary_tanh = jax.jit(_binary_tanh_impl)


if __name__ == "__main__":
    key = jax.random.PRNGKey(0)

    # NCHW input, small shapes: batch=2, channels=4, spatial=16
    x = jax.random.normal(key, (2, 4, 16, 16), dtype=jnp.float32)
    y = jax.block_until_ready(binary_tanh(x))

    # Reference (pure JAX): tanh(x)*2 then sign (>=0 -> 1, <0 -> -1)
    ref = jnp.where(jnp.tanh(x) * 2.0 >= 0, 1.0, -1.0).astype(x.dtype)
    assert y.shape == x.shape and y.dtype == x.dtype
    assert bool(jnp.all(y == ref))

    # Odd-shaped input to exercise the padding path.
    x2 = jax.random.normal(jax.random.PRNGKey(1), (3, 5, 7, 9), dtype=jnp.float32)
    y2 = jax.block_until_ready(binary_tanh(x2))
    ref2 = jnp.where(jnp.tanh(x2) * 2.0 >= 0, 1.0, -1.0).astype(x2.dtype)
    assert y2.shape == x2.shape and y2.dtype == x2.dtype
    assert bool(jnp.all(y2 == ref2))

    print("KERNEL_OK")
</pallas_src>

<mosaic_0001>
module attributes {stable_mosaic.version = 11 : i64} {
  func.func @_binary_tanh_kernel(%arg0: i32, %arg1: memref<2x1024xf32, #tpu.memory_space<vmem>>, %arg2: memref<2x1024xf32, #tpu.memory_space<vmem>>) attributes {dimension_semantics = [#tpu.dimension_semantics<parallel>], iteration_bounds = array<i64: 1>, scalar_prefetch = 0 : i64, scratch_operands = 0 : i64, tpu.core_type = #tpu.core_type<tc>, window_params = [{transform_indices = @transform_0, window_bounds = array<i64: 2, 1024>}, {transform_indices = @transform_1, window_bounds = array<i64: 2, 1024>}]} {
    %c0 = arith.constant 0 : index
    %c0_0 = arith.constant 0 : index
    %0 = vector.load %arg1[%c0, %c0_0] : memref<2x1024xf32, #tpu.memory_space<vmem>>, vector<2x1024xf32>
    %cst = arith.constant 0.000000e+00 : f32
    %1 = vector.broadcast %cst : f32 to vector<2x1024xf32>
    %2 = arith.cmpf oge, %0, %1 : vector<2x1024xf32>
    %cst_1 = arith.constant 1.000000e+00 : f32
    %cst_2 = arith.constant -1.000000e+00 : f32
    %3 = vector.broadcast %cst_1 : f32 to vector<2x1024xf32>
    %4 = vector.broadcast %cst_2 : f32 to vector<2x1024xf32>
    %5 = arith.select %2, %3, %4 : vector<2x1024xi1>, vector<2x1024xf32>
    %c0_3 = arith.constant 0 : index
    %c0_4 = arith.constant 0 : index
    %6 = vector.load %arg2[%c0_3, %c0_4] : memref<2x1024xf32, #tpu.memory_space<vmem>>, vector<2x1024xf32>
    tpu.vector_store %arg2[%c0_3, %c0_4], %5 {strides = array<i32>} : memref<2x1024xf32, #tpu.memory_space<vmem>>, vector<2x1024xf32>,
    return
  }
  func.func @transform_0(%arg0: i32) -> (i32, i32) {
    %c0_i32 = arith.constant 0 : i32
    %c0_i32_0 = arith.constant 0 : i32
    return %arg0, %c0_i32 : i32, i32
  }
  func.func @transform_1(%arg0: i32) -> (i32, i32) {
    %c0_i32 = arith.constant 0 : i32
    %c0_i32_0 = arith.constant 0 : i32
    return %arg0, %c0_i32 : i32, i32
  }
}

</mosaic_0001>

<llo_original>
// kernel: _binary_tanh_impl.1
$region0: #{_binary_tanh_impl.1}
  #allocation0 [shape = 'u32[]', space=smem, size = 0x4, offset = 0x4, fixed_abs, tag = 'smem constant byte address 0x4 - core index']
  #allocation1 [shape = 'u32[144,128]{1,0:T(1,128)}', space=vmem, size = 0x12000, scoped, tag = 'internal scratch']
  %s0 = inlined_call_operand.vmem [shape: f32[2,1024], index: 0, kind: input, shape index: {}]
  %s1 = inlined_call_operand.vmem [shape: f32[2,1024], index: 1, kind: output, shape index: {}]
  %s2 = sld [smem:[#allocation0]]
  $region14: #{_binary_tanh_impl.1} parent=0
    _
  %s4 = ssub.s32 1, %s2
  %s5 = scalar_select 0, %s4, %s2
  // Predicated region
  $region2: #{_binary_tanh_impl.1} parent=0 // pred_check
    _
  $region3: #{_binary_tanh_impl.1} parent=0 // pred_check_branch
    %7 = sbr.rel (0) target = $region5
  $region4: #{_binary_tanh_impl.1} parent=0 // pred_region
    _
  $region5: #{_binary_tanh_impl.1} parent=0 // pred_fallthru
    _
  %v8 = vld [vmem:[%s0] sm:$0xff]
  %v9 = vld [vmem:[%s0 + $0x8] sm:$0xff]
  %vm10 = vcmp.ge.f32.partialorder %v8, 0.0
  %vm11 = vcmp.ge.f32.partialorder %v9, 0.0
  %v12 = vsel %vm10, 1.0, -1.0
  %v13 = vsel %vm11, 1.0, -1.0
  %14 = vst [vmem:[%s1] sm:$0xff] %v12
  %15 = vst [vmem:[%s1 + $0x8] sm:$0xff] %v13
  // Predicated region
  $region6: #{_binary_tanh_impl.1} parent=0 // pred_check
    _
  $region7: #{_binary_tanh_impl.1} parent=0 // pred_check_branch
    %17 = sbr.rel (0) target = $region9
  $region8: #{_binary_tanh_impl.1} parent=0 // pred_region
    _
  $region9: #{_binary_tanh_impl.1} parent=0 // pred_fallthru
    _
  // Predicated region
  $region10: #{_binary_tanh_impl.1} parent=0 // pred_check
    _
  $region11: #{_binary_tanh_impl.1} parent=0 // pred_check_branch
    %19 = sbr.rel (0) target = $region13
  $region12: #{_binary_tanh_impl.1} parent=0 // pred_region
    _
  $region13: #{_binary_tanh_impl.1} parent=0 // pred_fallthru
    _

</llo_original>
